<compile_context>
chip_gen: v6e
topology: v6e:2x2x1
jax: 0.10.0
libtpu: 0.0.40
codegen_flags: <defaults>
</compile_context>

<pallas_src>
import functools

import jax
import jax.numpy as jnp
from jax.experimental import pallas as pl
from jax.experimental.pallas import tpu as pltpu


_LANE = 128
_SUBLANE = 8


def _round_up(n, m):
    return ((n + m - 1) // m) * m


def _vmem_capacity_bytes(default=64 << 20):
    """Physical VMEM bytes (conservative 64 MiB fallback = v7x)."""
    try:
        info = pltpu.get_tpu_info()
        cap = getattr(info, "vmem_capacity_bytes", None)
        if cap:
            return int(cap)
    except Exception:
        pass
    return default


def _ipow(x, n):
    """x**n for a small positive integer n via exponentiation by squaring."""
    result = None
    base = x
    while n:
        if n & 1:
            result = base if result is None else result * base
        n >>= 1
        if n:
            base = base * base
    return result


def _gem_kernel(p_ref, x_ref, o_ref, acc_ref, *,
                eps, hw, hw_block, num_k, p_int, compute_dtype):
    """One (row_block, hw_block) tile of the flattened (B*C, H*W) slab.

    p_ref  : SMEM (1,) float32 learnable exponent (unused on the static path)
    x_ref  : VMEM (row_block, hw_block) input tile
    o_ref  : VMEM (row_block, 1) output tile (resident across the H*W axis)
    acc_ref: VMEM (row_block, 1) float32 running sum of clamp(x, eps)^p
    """
    k = pl.program_id(1)

    @pl.when(k == 0)
    def _():
        acc_ref[...] = jnp.zeros_like(acc_ref)

    x = x_ref[...].astype(compute_dtype)
    xc = jnp.maximum(x, jnp.asarray(eps, dtype=compute_dtype))   # clamp(min=eps)

    if p_int is not None:
        # Static small-integer exponent: plain VPU multiplies (exp-by-squaring).
        xp = _ipow(xc, p_int)
    else:
        p = p_ref[0]
        xp = jnp.exp(p * jnp.log(xc))             # x^p for a learnable float p

    xp32 = xp.astype(jnp.float32)

    def _accumulate(vals):
        # Lane-tile folding inside jnp.sum is plain VPU adds; the single
        # cross-lane (XLU) reduce + narrow accumulator RMW happens once per
        # multi-MiB tile, which is noise in the HBM-bound regime.
        acc_ref[...] += jnp.sum(vals, axis=-1, keepdims=True)

    if hw % hw_block != 0:
        # Only the final H*W tile has padded tail columns; keep the mask ops
        # (iota / compare / select) out of every other grid step.
        last = num_k - 1
        n_valid = hw - last * hw_block            # static python int

        @pl.when(k != last)
        def _():
            _accumulate(xp32)

        @pl.when(k == last)
        def _():
            col = jax.lax.broadcasted_iota(jnp.int32, xp32.shape, 1)
            _accumulate(jnp.where(col < n_valid, xp32, 0.0))
    else:
        _accumulate(xp32)

    @pl.when(k == num_k - 1)
    def _():
        mean = acc_ref[...] * (1.0 / hw)          # avg_pool2d over all of (H, W)
        if p_int is not None:
            if p_int == 1:
                r = mean
            elif p_int == 2:
                r = jnp.sqrt(mean)
            elif p_int == 4:
                r = jnp.sqrt(jnp.sqrt(mean))
            else:
                r = jnp.exp(jnp.log(mean) * (1.0 / p_int))
        else:
            r = jnp.exp(jnp.log(mean) / p_ref[0])
        o_ref[...] = r.astype(o_ref.dtype)


def _choose_tiles(bc, hw, itemsize, sub_mult, target_bytes):
    """Pick (row_block, hw_block): big tiles <= ~target_bytes, layout-legal."""
    def lane_pad(n):
        return _round_up(n, _LANE)

    # Lane (H*W) tile: full extent whenever even a minimal-row slab fits the
    # budget (=> a single k step, no tail mask); otherwise a multiple of 128.
    if lane_pad(hw) * sub_mult * itemsize <= target_bytes:
        hw_block = hw
    else:
        hw_block = max(_LANE,
                       (target_bytes // (sub_mult * itemsize)) // _LANE * _LANE)

    # Sublane (B*C) tile: as many rows as fit the budget (using the VMEM
    # lane-padded row width), rounded to the dtype sublane multiple.
    # NOTE: no artificial row cap — small-H*W heads get multi-MiB row tiles.
    row_bytes = lane_pad(hw_block) * itemsize
    rows_fit = max(sub_mult, target_bytes // row_bytes)
    if bc <= rows_fit:
        row_block = bc                 # full extent is always layout-legal
    else:
        row_block = max(sub_mult, (rows_fit // sub_mult) * sub_mult)
    return row_block, hw_block


def gem_pallas(x, p=3.0, eps=1e-6, *, target_bytes=None):
    """GeM pooling. x: (B, C, H, W); p: python number or shape-(1,) array (>0)."""
    B, C, H, W = x.shape
    BC, HW = B * C, H * W
    x2d = x.reshape(BC, HW)

    # Static small-integer fast path: python numbers, or concrete (non-traced)
    # arrays whose single value is a small integer (e.g. the default p=3 init).
    # Traced / non-integer p takes the general exp(p*log x) path.
    p_int = None
    if isinstance(p, (int, float)):
        if float(p) == int(p) and 1 <= int(p) <= 8:
            p_int = int(p)
    else:
        try:
            pv = float(jnp.asarray(p).reshape(-1)[0])   # raises if traced
            if pv == int(pv) and 1 <= int(pv) <= 8:
                p_int = int(pv)
        except Exception:
            p_int = None
    p_arr = jnp.asarray(p, dtype=jnp.float32).reshape(1)

    itemsize = jnp.dtype(x.dtype).itemsize
    sub_mult = _SUBLANE * max(1, 4 // itemsize)     # 8 f32 / 16 bf16 / 32 int8

    vmem_cap = _vmem_capacity_bytes()
    if target_bytes is None:
        # ~1/8 of physical VMEM per input tile; double-buffering uses ~1/4.
        # (8 MiB on 64 MiB v7x, 16 MiB on 128 MiB v5e/v6e.)
        target_bytes = int(min(max(vmem_cap // 8, 4 << 20), 16 << 20))

    row_block, hw_block = _choose_tiles(BC, HW, itemsize, sub_mult, target_bytes)
    num_k = pl.cdiv(HW, hw_block)
    grid = (pl.cdiv(BC, row_block), num_k)

    # bf16 inputs keep the elementwise work in bf16 (packed VPU on v6e/v7x),
    # widening to f32 only for the accumulation; learnable-p stays f32.
    compute_dtype = (x.dtype if (x.dtype == jnp.bfloat16 and p_int is not None)
                     else jnp.float32)

    # Scoped-VMEM budget from the actual padded buffers: 2x double-buffered
    # input tile + room for f32 elementwise temporaries/spills + headroom,
    # clamped below physical VMEM.
    rp = _round_up(row_block, sub_mult)
    hwp = _round_up(hw_block, _LANE)
    in_tile_vmem = rp * hwp * itemsize
    vmem_limit = 2 * in_tile_vmem + 2 * rp * hwp * 4 + (16 << 20)
    vmem_limit = int(min(max(vmem_limit, 32 << 20),
                         max(vmem_cap - (16 << 20), 32 << 20)))

    kernel = functools.partial(
        _gem_kernel, eps=float(eps), hw=HW, hw_block=hw_block,
        num_k=num_k, p_int=p_int, compute_dtype=compute_dtype)

    out = pl.pallas_call(
        kernel,
        out_shape=jax.ShapeDtypeStruct((BC, 1), x.dtype),
        grid_spec=pltpu.PrefetchScalarGridSpec(
            num_scalar_prefetch=0,
            grid=grid,
            in_specs=[
                pl.BlockSpec(memory_space=pltpu.MemorySpace.SMEM),         # p
                pl.BlockSpec((row_block, hw_block), lambda i, k: (i, k)),  # x
            ],
            out_specs=pl.BlockSpec((row_block, 1), lambda i, k: (i, 0)),
            scratch_shapes=[pltpu.VMEM((row_block, 1), jnp.float32)],
        ),
        compiler_params=pltpu.CompilerParams(
            dimension_semantics=("parallel", "arbitrary"),
            vmem_limit_bytes=vmem_limit,
        ),
    )(p_arr, x2d)

    return out.reshape(B, C, 1, 1)


def _gem_ref(x, p, eps=1e-6):
    """Pure-JAX reference (same math as the F.avg_pool2d path)."""
    pf = jnp.asarray(p, dtype=jnp.float32).reshape(())
    xp = jnp.maximum(x.astype(jnp.float32), eps) ** pf
    m = jnp.mean(xp, axis=(-2, -1), keepdims=True)
    return (m ** (1.0 / pf)).astype(x.dtype)


if __name__ == "__main__":
    key = jax.random.PRNGKey(0)
    eps = 1e-6

    # 1) Learnable-parameter path (matches GeM.__init__: p = ones(1) * 3).
    #    Concrete integer-valued p is snapshot to the static fast path.
    B, C, H, W = 2, 4, 16, 16
    x = jax.random.uniform(jax.random.fold_in(key, 0), (B, C, H, W),
                           dtype=jnp.float32)
    p_param = jnp.ones((1,), dtype=jnp.float32) * 3.0
    y = jax.block_until_ready(gem_pallas(x, p_param, eps))
    assert y.shape == (B, C, 1, 1), y.shape
    assert jnp.allclose(y, _gem_ref(x, p_param, eps), rtol=1e-4, atol=1e-5)

    # 2) Static integer-p fast path (VPU power, no transcendentals).
    y_fast = jax.block_until_ready(gem_pallas(x, 3, eps))
    assert jnp.allclose(y_fast, _gem_ref(x, 3.0, eps), rtol=1e-4, atol=1e-5)

    # 3) Force a multi-tile grid (partial row tile + masked H*W tail) with a
    #    tiny tile budget to exercise the tiled accumulator + general p path.
    B2, C2, H2, W2 = 3, 4, 15, 20          # BC=12 (not /8), HW=300 (not /128)
    x2 = jax.random.uniform(jax.random.fold_in(key, 1), (B2, C2, H2, W2),
                            dtype=jnp.float32)
    p2 = jnp.asarray([2.5], dtype=jnp.float32)
    y2 = jax.block_until_ready(gem_pallas(x2, p2, eps, target_bytes=4096))
    assert y2.shape == (B2, C2, 1, 1), y2.shape
    assert jnp.allclose(y2, _gem_ref(x2, p2, eps), rtol=1e-4, atol=1e-5)

    # 4) bf16 input: elementwise clamp/power in bf16, f32 accumulation.
    xb = x.astype(jnp.bfloat16)
    yb = jax.block_until_ready(gem_pallas(xb, 3, eps))
    assert yb.shape == (B, C, 1, 1), yb.shape
    assert jnp.allclose(yb.astype(jnp.float32),
                        _gem_ref(xb, 3.0, eps).astype(jnp.float32),
                        rtol=3e-2, atol=1e-3)

    print("KERNEL_OK")
</pallas_src>

<mosaic_0001>
module attributes {stable_mosaic.version = 11 : i64} {
  func.func @_gem_kernel(%arg0: i32, %arg1: i32, %arg2: memref<1xf32, #tpu.memory_space<smem>>, %arg3: memref<8x256xf32, #tpu.memory_space<vmem>>, %arg4: memref<8x1xf32, #tpu.memory_space<vmem>>, %arg5: memref<8x1xf32, #tpu.memory_space<vmem>>) attributes {dimension_semantics = [#tpu.dimension_semantics<parallel>, #tpu.dimension_semantics<arbitrary>], iteration_bounds = array<i64: 1, 1>, scalar_prefetch = 0 : i64, scratch_operands = 1 : i64, tpu.core_type = #tpu.core_type<tc>, window_params = [{transform_indices = @transform_0, window_bounds = array<i64: 1>}, {transform_indices = @transform_1, window_bounds = array<i64: 8, 256>}, {transform_indices = @transform_2, window_bounds = array<i64: 8, 1>}]} {
    %c0_i32 = arith.constant 0 : i32
    %0 = arith.cmpi eq, %arg1, %c0_i32 : i32
    %1 = arith.extui %0 : i1 to i32
    %c0_i32_0 = arith.constant 0 : i32
    %2 = arith.cmpi ne, %1, %c0_i32_0 : i32
    scf.if %2 {
      %cst_9 = arith.constant 0.000000e+00 : f32
      %16 = vector.broadcast %cst_9 : f32 to vector<8x1xf32>
      %c0_10 = arith.constant 0 : index
      %c0_11 = arith.constant 0 : index
      %17 = vector.load %arg5[%c0_10, %c0_11] : memref<8x1xf32, #tpu.memory_space<vmem>>, vector<8x1xf32>
      tpu.vector_store %arg5[%c0_10, %c0_11], %16 {strides = array<i32>} : memref<8x1xf32, #tpu.memory_space<vmem>>, vector<8x1xf32>,
    } else {
    }
    %c0 = arith.constant 0 : index
    %c0_1 = arith.constant 0 : index
    %3 = vector.load %arg3[%c0, %c0_1] : memref<8x256xf32, #tpu.memory_space<vmem>>, vector<8x256xf32>
    %cst = arith.constant 9.99999997E-7 : f32
    %4 = vector.broadcast %cst : f32 to vector<8x256xf32>
    %5 = arith.maximumf %3, %4 : vector<8x256xf32>
    %6 = arith.mulf %5, %5 : vector<8x256xf32>
    %7 = arith.mulf %5, %6 : vector<8x256xf32>
    %c0_2 = arith.constant 0 : index
    %c0_3 = arith.constant 0 : index
    %8 = vector.load %arg5[%c0_2, %c0_3] : memref<8x1xf32, #tpu.memory_space<vmem>>, vector<8x1xf32>
    %cst_4 = arith.constant dense<0.000000e+00> : vector<8xf32>
    %9 = vector.multi_reduction <add>, %7, %cst_4 [1] : vector<8x256xf32> to vector<8xf32>
    %10 = vector.shape_cast %9 : vector<8xf32> to vector<8x1xf32>
    %11 = arith.addf %8, %10 : vector<8x1xf32>
    %c0_5 = arith.constant 0 : index
    %c0_6 = arith.constant 0 : index
    %12 = vector.load %arg5[%c0_5, %c0_6] : memref<8x1xf32, #tpu.memory_space<vmem>>, vector<8x1xf32>
    tpu.vector_store %arg5[%c0_5, %c0_6], %11 {strides = array<i32>} : memref<8x1xf32, #tpu.memory_space<vmem>>, vector<8x1xf32>,
    %c0_i32_7 = arith.constant 0 : i32
    %13 = arith.cmpi eq, %arg1, %c0_i32_7 : i32
    %14 = arith.extui %13 : i1 to i32
    %c0_i32_8 = arith.constant 0 : i32
    %15 = arith.cmpi ne, %14, %c0_i32_8 : i32
    scf.if %15 {
      %c0_9 = arith.constant 0 : index
      %c0_10 = arith.constant 0 : index
      %16 = vector.load %arg5[%c0_9, %c0_10] : memref<8x1xf32, #tpu.memory_space<vmem>>, vector<8x1xf32>
      %cst_11 = arith.constant 3.906250e-03 : f32
      %17 = vector.broadcast %cst_11 : f32 to vector<8x1xf32>
      %18 = arith.mulf %16, %17 : vector<8x1xf32>
      %19 = math.log %18 : vector<8x1xf32>
      %cst_12 = arith.constant 0.333333343 : f32
      %20 = vector.broadcast %cst_12 : f32 to vector<8x1xf32>
      %21 = arith.mulf %19, %20 : vector<8x1xf32>
      %22 = math.exp %21 : vector<8x1xf32>
      %c0_13 = arith.constant 0 : index
      %c0_14 = arith.constant 0 : index
      %23 = vector.load %arg4[%c0_13, %c0_14] : memref<8x1xf32, #tpu.memory_space<vmem>>, vector<8x1xf32>
      tpu.vector_store %arg4[%c0_13, %c0_14], %22 {strides = array<i32>} : memref<8x1xf32, #tpu.memory_space<vmem>>, vector<8x1xf32>,
    } else {
    }
    return
  }
  func.func @transform_0(%arg0: i32, %arg1: i32) -> i32 {
    %c0_i32 = arith.constant 0 : i32
    %c0_i32_0 = arith.constant 0 : i32
    return %c0_i32 : i32
  }
  func.func @transform_1(%arg0: i32, %arg1: i32) -> (i32, i32) {
    %c0_i32 = arith.constant 0 : i32
    return %arg0, %arg1 : i32, i32
  }
  func.func @transform_2(%arg0: i32, %arg1: i32) -> (i32, i32) {
    %c0_i32 = arith.constant 0 : i32
    %c0_i32_0 = arith.constant 0 : i32
    return %arg0, %c0_i32 : i32, i32
  }
}

</mosaic_0001>

<llo_original>
// kernel: tpu_custom_call.1
$region0: #{tpu_custom_call.1}
  #allocation0 [shape = 'u32[]', space=smem, size = 0x4, offset = 0x4, fixed_abs, tag = 'smem constant byte address 0x4 - core index']
  #allocation1 [shape = 'u32[144,128]{1,0:T(1,128)}', space=vmem, size = 0x12000, scoped, tag = 'internal scratch']
  #allocation2 [shape = 'f32[8,1]{1,0:T(8,128)}', space=vmem, size = 0x1000, scoped, tag = 'scratch operand']
  #allocation3 [shape = 'f32[1]{0:T(128)S(6)}', space=smem, size = 0x200, scoped, tag = 'scoped memory for tpu_custom_call.1']
  %s0 = inlined_call_operand.<no memory space> [shape: f32[1], index: 0, kind: input, shape index: {}]
  %s1 = inlined_call_operand.hbm [shape: f32[8,256], index: 1, kind: input, shape index: {}]
  %s2 = inlined_call_operand.vmem [shape: f32[8,1], index: 2, kind: output, shape index: {}]
  %s3 = sld [smem:[#allocation0]]
  $region30: #{tpu_custom_call.1} parent=0
    _
  %s5 = ssub.s32 1, %s3
  %s6 = scalar_select 0, %s5, %s3
  %7 = sst [smem:[#allocation3]] %s0
  $region1: #{tpu_custom_call.1} parent=0
    #allocation4 [shape = 'u8[8192]{0}', space=vmem, size = 0x2000, scoped, tag = 'input window, operand 1, single buffered']
    #allocation5 [shape = 's32[1]{0}', space=sflag, size = 0x4, scoped, tag = 'scoped memory for tpu_custom_call.1']
    %8 = vsyncpa [#allocation5], 0
    // Predicated region
    $region2: #{tpu_custom_call.1} parent=1 // pred_check
      _
    $region3: #{tpu_custom_call.1} parent=1 // pred_check_branch
      %10 = sbr.rel (0) target = $region5
    $region4: #{tpu_custom_call.1} parent=1 // pred_region
      _
    $region5: #{tpu_custom_call.1} parent=1 // pred_fallthru
      _
    // Predicated region
    $region6: #{tpu_custom_call.1} parent=1 // pred_check
      _
    $region7: #{tpu_custom_call.1} parent=1 // pred_check_branch
      %12 = sbr.rel (0) target = $region9
    $region8: #{tpu_custom_call.1} parent=1 // pred_region
      %s14 = ssub.s32 256, 256
      %15 = vsyncadd [#allocation5], %s14
      %s17 = sshll.u32 [#allocation4], 4
      %s18 = int_to_ptr.vmem [resolvable:$true] %s17
      %20 = dma.hbm_to_vmem [thread:$0]  %s1, 256, %s18, [#allocation5]
    $region9: #{tpu_custom_call.1} parent=1 // pred_fallthru
      _
    // Predicated region
    $region10: #{tpu_custom_call.1} parent=1 // pred_check
      _
    $region11: #{tpu_custom_call.1} parent=1 // pred_check_branch
      %22 = sbr.rel (0) target = $region13
    $region12: #{tpu_custom_call.1} parent=1 // pred_region
      %23 = dma.done [#allocation5], 256
    $region13: #{tpu_custom_call.1} parent=1 // pred_fallthru
      _
    %p24 = scmp.eq.s32.totalorder 0, 0
    // Predicated region
    $region14: #{tpu_custom_call.1} parent=1 // pred_check
      %p25 = pneg %p24
    $region15: #{tpu_custom_call.1} parent=1 // pred_check_branch
      %27 = sbr.rel (%p25) target = $region17
    $region16: #{tpu_custom_call.1} parent=1 // pred_region
      %vm28 = vcmask 7168
      %29 = vst.msk [vmem:[#allocation2] sm:$0xff] %vm28, 0.0
    $region17: #{tpu_custom_call.1} parent=1 // pred_fallthru
      _
    %v30 = vld [vmem:[#allocation4] sm:$0xff]
    %v31 = vld [vmem:[#allocation4 + $0x8] sm:$0xff]
    %v32 = vmax.f32 %v30, 1e-06
    %v33 = vmax.f32 %v31, 1e-06
    %v34 = vmul.f32 %v32, %v32
    %v35 = vmul.f32 %v33, %v33
    %v36 = vmul.f32 %v32, %v34
    %v37 = vmul.f32 %v33, %v35
    %v38 = vld [vmem:[#allocation2] sm:$0xff]
    %v39 = vadd.f32 %v36, %v37
    %40 = vadd.xlane.f32.xlu0 %v39
    %v41 = vpop.xlane.xlu0 %40
    %v42 = vadd.f32 %v38, %v41
    %vm43 = vcmask 7168
    %44 = vst.msk [vmem:[#allocation2] sm:$0xff] %vm43, %v42
    // Predicated region
    $region18: #{tpu_custom_call.1} parent=1 // pred_check
      %p45 = pneg %p24
    $region19: #{tpu_custom_call.1} parent=1 // pred_check_branch
      %47 = sbr.rel (%p45) target = $region21
    $region20: #{tpu_custom_call.1} parent=1 // pred_region
      %v48 = vld [vmem:[#allocation2] sm:$0xff]
      %v49 = vmul.f32 %v48, 0.00390625
      %v50 = vlog2.pop %v49
      %v51 = vmul.f32 %v50, 0.6931472
      %v52 = vmul.f32 %v51, 0.33333334
      %v53 = vmul.f32 %v52, 1.442695
      %v54 = vpow.pop %v53
      %55 = vst.msk [vmem:[%s2] sm:$0xff] %vm43, %v54
    $region21: #{tpu_custom_call.1} parent=1 // pred_fallthru
      _
    // Predicated region
    $region22: #{tpu_custom_call.1} parent=1 // pred_check
      _
    $region23: #{tpu_custom_call.1} parent=1 // pred_check_branch
      %57 = sbr.rel (0) target = $region25
    $region24: #{tpu_custom_call.1} parent=1 // pred_region
      _
    $region25: #{tpu_custom_call.1} parent=1 // pred_fallthru
      _
    // Predicated region
    $region26: #{tpu_custom_call.1} parent=1 // pred_check
      _
    $region27: #{tpu_custom_call.1} parent=1 // pred_check_branch
      %59 = sbr.rel (0) target = $region29
    $region28: #{tpu_custom_call.1} parent=1 // pred_region
      _
    $region29: #{tpu_custom_call.1} parent=1 // pred_fallthru
      _
    %60 = vsyncpa [#allocation5], 1

</llo_original>
